<compile_context>
chip_gen: v6e
topology: v6e:2x2x1
jax: 0.10.0
libtpu: 0.0.40
codegen_flags: <defaults>
</compile_context>

<pallas_src>
import functools

import jax
import jax.numpy as jnp
from jax.experimental import pallas as pl
from jax.experimental.pallas import tpu as pltpu


# ---------------------------------------------------------------------------
# Kernel
# ---------------------------------------------------------------------------
def _layernorm_kernel(x_ref, gamma_ref, beta_ref, o_ref, *, eps):
    """LayerNorm over the lane axis of a (tile_rows, d_model) block.

    Matches the PyTorch module: mean and population variance (unbiased=False)
    over the last dim, then gamma * xhat + beta.  Statistics are in f32
    regardless of input dtype.
    """
    # ---- pass 1: row statistics (f32) -------------------------------------
    x = x_ref[...].astype(jnp.float32)
    mean = jnp.mean(x, axis=-1, keepdims=True)
    centered = x - mean
    var = jnp.mean(centered * centered, axis=-1, keepdims=True)  # unbiased=False
    inv = jax.lax.rsqrt(var + eps)  # EUP slot -> effectively free here

    # ---- pass 2: normalize --------------------------------------------------
    # Re-read x_ref and recompute (x - mean) instead of carrying the full-tile
    # f32 `x` / `centered` across the reduce->normalize boundary: only the
    # (tile_rows, 1) stats need to stay live, cutting VMEM temporaries and
    # vld/vst traffic for large tiles (most valuable on v7x's 64 MiB VMEM).
    g = gamma_ref[...].astype(jnp.float32)
    b = beta_ref[...].astype(jnp.float32)
    xhat = (x_ref[...].astype(jnp.float32) - mean) * inv
    o_ref[...] = (g * xhat + b).astype(o_ref.dtype)


# ---------------------------------------------------------------------------
# Tile / VMEM planning (one shared per-row accounting)
# ---------------------------------------------------------------------------
_F32_TEMP_BYTES_PER_ELEM = 4          # one f32 working sweep (after the re-read opt)
_TARGET_BLOCK_BYTES = 4 * 1024 * 1024  # ~4 MiB input blocks sit on the HBM roofline
_MIN_GRID_STEPS = 4                    # >= 2 steps per TensorCore on v7x megacore
_MIN_SPLIT_BLOCK_BYTES = 512 * 1024    # only enforce min steps for non-tiny problems


def _round_up(x, m):
    return (x + m - 1) // m * m


def _sublane_rows(itemsize):
    # dtype sublane packing: 8 rows/vreg for f32, 16 for bf16, 32 for int8/fp8.
    return max(8, 32 // max(int(itemsize), 1))


def _bytes_per_row(d_model, in_itemsize, out_itemsize):
    # double-buffered input + double-buffered output + one f32 temp sweep.
    return d_model * (2 * in_itemsize + 2 * out_itemsize + _F32_TEMP_BYTES_PER_ELEM)


def _vmem_capacity_bytes():
    try:
        return int(pltpu.get_tpu_info().vmem_capacity_bytes)
    except Exception:
        # Conservative fallback = v7x per-TC VMEM.
        return 64 * 1024 * 1024


def _choose_tile_rows(rows, d_model, in_itemsize, out_itemsize, sub, vmem_budget):
    """Pick a row tile (multiple of the dtype sublane packing) that
    (a) fits the VMEM budget, (b) targets ~4 MiB input blocks, and
    (c) leaves >= _MIN_GRID_STEPS grid steps for non-tiny problems."""
    bpr = _bytes_per_row(d_model, in_itemsize, out_itemsize)

    # (a) largest tile fitting the budget.
    tile = max(sub, vmem_budget // max(bpr, 1))

    # (b) ...but no fatter than the roofline needs: ~4 MiB of input per block.
    target_rows = max(sub, _TARGET_BLOCK_BYTES // max(d_model * in_itemsize, 1))
    tile = min(tile, target_rows)

    # (c) keep enough grid steps for v7x megacore sharding + DMA pipelining,
    # but only when each resulting block is still reasonably fat.
    total_in_bytes = rows * d_model * in_itemsize
    if rows >= _MIN_GRID_STEPS * sub and total_in_bytes >= _MIN_GRID_STEPS * _MIN_SPLIT_BLOCK_BYTES:
        tile = min(tile, max(sub, (rows // _MIN_GRID_STEPS) // sub * sub))

    tile = (tile // sub) * sub
    tile = min(tile, _round_up(rows, sub))
    return max(tile, sub)


def _vmem_limit_bytes(tile_rows, d_model, in_itemsize, out_itemsize, param_itemsize, capacity):
    """Scoped-VMEM limit derived from the same accounting as the tile chooser."""
    block_bytes = tile_rows * _bytes_per_row(d_model, in_itemsize, out_itemsize)
    # gamma + beta: double-buffered, plus their f32 upcasts inside the kernel.
    param_bytes = 2 * d_model * (2 * param_itemsize + 4)
    headroom = 4 * 1024 * 1024
    limit = block_bytes + param_bytes + headroom
    # Never below the default scoped limit (safe), never within 16 MiB of the
    # physical capacity (avoids OOM on v7x while using v5e/v6e's 128 MiB).
    cap = max(capacity - 16 * 1024 * 1024, 32 * 1024 * 1024)
    return int(min(max(limit, 32 * 1024 * 1024), cap))


# ---------------------------------------------------------------------------
# Wrapper
# ---------------------------------------------------------------------------
def layernorm(x, gamma, beta, *, eps=1e-12, tile_rows=None):
    """LayerNorm over the last axis of x.

    x:     (..., d_model)
    gamma: (d_model,)
    beta:  (d_model,)

    NOTE: this module's default eps is 1e-12 (torch.nn.LayerNorm would be
    1e-5); we follow the module being ported.
    """
    orig_shape = x.shape
    d_model = orig_shape[-1]
    rows = 1
    for s in orig_shape[:-1]:
        rows *= s
    if rows == 0:
        return x

    x2 = x.reshape(rows, d_model)
    gamma2 = gamma.reshape(1, d_model)
    beta2 = beta.reshape(1, d_model)

    in_itemsize = x2.dtype.itemsize
    out_itemsize = in_itemsize
    param_itemsize = max(gamma2.dtype.itemsize, beta2.dtype.itemsize)
    sub = _sublane_rows(in_itemsize)

    capacity = _vmem_capacity_bytes()
    # Generation-aware streaming budget: ~24 MiB on v7x (64 MiB physical),
    # ~56 MiB on v5e/v6e (128 MiB physical).
    vmem_budget = max(capacity // 2 - 8 * 1024 * 1024, 16 * 1024 * 1024)

    if tile_rows is None:
        tile_rows = _choose_tile_rows(rows, d_model, in_itemsize, out_itemsize, sub, vmem_budget)
    else:
        tile_rows = max(sub, min(_round_up(tile_rows, sub), _round_up(rows, sub)))

    # cdiv grid: the ragged tail block may compute NaN/garbage on padded OOB
    # rows, but those stores are masked, so visible results are correct.
    grid = (pl.cdiv(rows, tile_rows),)

    kernel = functools.partial(_layernorm_kernel, eps=eps)

    # Advisory cost for XLA scheduling: streaming read + write of the slab.
    cost = pl.CostEstimate(
        flops=10 * rows * d_model,
        transcendentals=rows,
        bytes_accessed=rows * d_model * (in_itemsize + out_itemsize)
        + 2 * d_model * param_itemsize,
    )

    vmem_limit = _vmem_limit_bytes(
        tile_rows, d_model, in_itemsize, out_itemsize, param_itemsize, capacity
    )

    # NOTE: for d_model not a multiple of 128 the lane axis is under-filled
    # (masked partial stores) -> correct but slow fallback path.  Production
    # transformer widths (multiples of 128) hit the lane-dense fast path.
    out2 = pl.pallas_call(
        kernel,
        out_shape=jax.ShapeDtypeStruct((rows, d_model), x.dtype),
        grid_spec=pltpu.PrefetchScalarGridSpec(
            num_scalar_prefetch=0,
            grid=grid,
            in_specs=[
                pl.BlockSpec((tile_rows, d_model), lambda i: (i, 0)),
                pl.BlockSpec((1, d_model), lambda i: (0, 0)),
                pl.BlockSpec((1, d_model), lambda i: (0, 0)),
            ],
            out_specs=pl.BlockSpec((tile_rows, d_model), lambda i: (i, 0)),
        ),
        compiler_params=pltpu.CompilerParams(
            dimension_semantics=("parallel",),
            vmem_limit_bytes=vmem_limit,
        ),
        cost_estimate=cost,
    )(x2, gamma2, beta2)

    return out2.reshape(orig_shape)


# ---------------------------------------------------------------------------
# Reference + self-test
# ---------------------------------------------------------------------------
def _reference(x, gamma, beta, eps):
    mean = jnp.mean(x, axis=-1, keepdims=True)
    var = jnp.mean((x - mean) ** 2, axis=-1, keepdims=True)
    return gamma * ((x - mean) / jnp.sqrt(var + eps)) + beta


if __name__ == "__main__":
    eps = 1e-12
    key = jax.random.PRNGKey(0)
    k1, k2 = jax.random.split(key)

    # Case 1: lane-dense production-style shape (d_model multiple of 128).
    batch, seq, d_model = 2, 8, 128
    x = jax.random.normal(k1, (batch, seq, d_model), dtype=jnp.float32)
    gamma = jnp.ones((d_model,), dtype=jnp.float32)   # nn.Parameter(torch.ones(d_model))
    beta = jnp.zeros((d_model,), dtype=jnp.float32)   # nn.Parameter(torch.zeros(d_model))

    out = layernorm(x, gamma, beta, eps=eps)
    out = jax.block_until_ready(out)
    ref = _reference(x, gamma, beta, eps)
    assert out.shape == x.shape
    assert jnp.allclose(out, ref, atol=1e-5, rtol=1e-5)

    # Case 2: small / non-128 feature dim and ragged row count (exercises the
    # full-extent lane block and the cdiv grid with a padded tail block).
    b2, s2, d2 = 3, 5, 32
    x2 = jax.random.normal(k2, (b2, s2, d2), dtype=jnp.float32)
    g2 = jnp.ones((d2,), dtype=jnp.float32)
    be2 = jnp.zeros((d2,), dtype=jnp.float32)

    out2 = layernorm(x2, g2, be2, eps=eps)
    out2 = jax.block_until_ready(out2)
    ref2 = _reference(x2, g2, be2, eps)
    assert out2.shape == x2.shape
    assert jnp.allclose(out2, ref2, atol=1e-5, rtol=1e-5)

    print("KERNEL_OK")
</pallas_src>

<mosaic_0001>
module attributes {stable_mosaic.version = 11 : i64} {
  func.func @_layernorm_kernel(%arg0: i32, %arg1: memref<16x128xf32, #tpu.memory_space<vmem>>, %arg2: memref<1x128xf32, #tpu.memory_space<vmem>>, %arg3: memref<1x128xf32, #tpu.memory_space<vmem>>, %arg4: memref<16x128xf32, #tpu.memory_space<vmem>>) attributes {dimension_semantics = [#tpu.dimension_semantics<parallel>], iteration_bounds = array<i64: 1>, scalar_prefetch = 0 : i64, scratch_operands = 0 : i64, tpu.core_type = #tpu.core_type<tc>, window_params = [{transform_indices = @transform_0, window_bounds = array<i64: 16, 128>}, {pipeline_mode = #tpu.pipeline_mode<synchronous>, transform_indices = @transform_1, window_bounds = array<i64: 1, 128>}, {pipeline_mode = #tpu.pipeline_mode<synchronous>, transform_indices = @transform_2, window_bounds = array<i64: 1, 128>}, {transform_indices = @transform_3, window_bounds = array<i64: 16, 128>}]} {
    %c0 = arith.constant 0 : index
    %c0_0 = arith.constant 0 : index
    %0 = vector.load %arg1[%c0, %c0_0] : memref<16x128xf32, #tpu.memory_space<vmem>>, vector<16x128xf32>
    %cst = arith.constant dense<0.000000e+00> : vector<16xf32>
    %1 = vector.multi_reduction <add>, %0, %cst [1] : vector<16x128xf32> to vector<16xf32>
    %2 = vector.shape_cast %1 : vector<16xf32> to vector<16x1xf32>
    %cst_1 = arith.constant 1.280000e+02 : f32
    %3 = vector.broadcast %cst_1 : f32 to vector<16x1xf32>
    %4 = arith.divf %2, %3 : vector<16x1xf32>
    %5 = vector.broadcast %4 : vector<16x1xf32> to vector<16x128xf32>
    %6 = arith.subf %0, %5 : vector<16x128xf32>
    %7 = arith.mulf %6, %6 : vector<16x128xf32>
    %cst_2 = arith.constant dense<0.000000e+00> : vector<16xf32>
    %8 = vector.multi_reduction <add>, %7, %cst_2 [1] : vector<16x128xf32> to vector<16xf32>
    %9 = vector.shape_cast %8 : vector<16xf32> to vector<16x1xf32>
    %cst_3 = arith.constant 1.280000e+02 : f32
    %10 = vector.broadcast %cst_3 : f32 to vector<16x1xf32>
    %11 = arith.divf %9, %10 : vector<16x1xf32>
    %cst_4 = arith.constant 9.99999996E-13 : f32
    %12 = vector.broadcast %cst_4 : f32 to vector<16x1xf32>
    %13 = arith.addf %11, %12 : vector<16x1xf32>
    %14 = math.rsqrt %13 : vector<16x1xf32>
    %c0_5 = arith.constant 0 : index
    %c0_6 = arith.constant 0 : index
    %15 = vector.load %arg2[%c0_5, %c0_6] : memref<1x128xf32, #tpu.memory_space<vmem>>, vector<1x128xf32>
    %c0_7 = arith.constant 0 : index
    %c0_8 = arith.constant 0 : index
    %16 = vector.load %arg3[%c0_7, %c0_8] : memref<1x128xf32, #tpu.memory_space<vmem>>, vector<1x128xf32>
    %c0_9 = arith.constant 0 : index
    %c0_10 = arith.constant 0 : index
    %17 = vector.load %arg1[%c0_9, %c0_10] : memref<16x128xf32, #tpu.memory_space<vmem>>, vector<16x128xf32>
    %18 = vector.broadcast %4 : vector<16x1xf32> to vector<16x128xf32>
    %19 = arith.subf %17, %18 : vector<16x128xf32>
    %20 = vector.broadcast %14 : vector<16x1xf32> to vector<16x128xf32>
    %21 = arith.mulf %19, %20 : vector<16x128xf32>
    %22 = vector.broadcast %15 : vector<1x128xf32> to vector<16x128xf32>
    %23 = arith.mulf %22, %21 : vector<16x128xf32>
    %24 = vector.broadcast %16 : vector<1x128xf32> to vector<16x128xf32>
    %25 = arith.addf %23, %24 : vector<16x128xf32>
    %c0_11 = arith.constant 0 : index
    %c0_12 = arith.constant 0 : index
    %26 = vector.load %arg4[%c0_11, %c0_12] : memref<16x128xf32, #tpu.memory_space<vmem>>, vector<16x128xf32>
    tpu.vector_store %arg4[%c0_11, %c0_12], %25 {strides = array<i32>} : memref<16x128xf32, #tpu.memory_space<vmem>>, vector<16x128xf32>,
    return
  }
  func.func @transform_0(%arg0: i32) -> (i32, i32) {
    %c0_i32 = arith.constant 0 : i32
    %c0_i32_0 = arith.constant 0 : i32
    return %arg0, %c0_i32 : i32, i32
  }
  func.func @transform_1(%arg0: i32) -> (i32, i32) {
    %c0_i32 = arith.constant 0 : i32
    %c0_i32_0 = arith.constant 0 : i32
    %c0_i32_1 = arith.constant 0 : i32
    return %c0_i32, %c0_i32_0 : i32, i32
  }
  func.func @transform_2(%arg0: i32) -> (i32, i32) {
    %c0_i32 = arith.constant 0 : i32
    %c0_i32_0 = arith.constant 0 : i32
    %c0_i32_1 = arith.constant 0 : i32
    return %c0_i32, %c0_i32_0 : i32, i32
  }
  func.func @transform_3(%arg0: i32) -> (i32, i32) {
    %c0_i32 = arith.constant 0 : i32
    %c0_i32_0 = arith.constant 0 : i32
    return %arg0, %c0_i32 : i32, i32
  }
}

</mosaic_0001>

<llo_original>
// kernel: tpu_custom_call.1
$region0: #{tpu_custom_call.1}
  #allocation0 [shape = 'u32[]', space=smem, size = 0x4, offset = 0x4, fixed_abs, tag = 'smem constant byte address 0x4 - core index']
  #allocation1 [shape = 'u32[144,128]{1,0:T(1,128)}', space=vmem, size = 0x12000, scoped, tag = 'internal scratch']
  %s0 = inlined_call_operand.hbm [shape: f32[16,128], index: 0, kind: input, shape index: {}]
  %s1 = inlined_call_operand.vmem [shape: f32[1,128], index: 1, kind: input, shape index: {}]
  %s2 = inlined_call_operand.vmem [shape: f32[1,128], index: 2, kind: input, shape index: {}]
  %s3 = inlined_call_operand.hbm [shape: f32[16,128], index: 3, kind: output, shape index: {}]
  %s4 = sld [smem:[#allocation0]]
  $region26: #{tpu_custom_call.1} parent=0
    _
  %s6 = ssub.s32 1, %s4
  %s7 = scalar_select 0, %s6, %s4
  $region1: #{tpu_custom_call.1} parent=0
    #allocation2 [shape = 'u8[8192]{0}', space=vmem, size = 0x2000, scoped, tag = 'input window, operand 0, single buffered']
    #allocation3 [shape = 's32[1]{0}', space=sflag, size = 0x4, scoped, tag = 'scoped memory for tpu_custom_call.1']
    #allocation4 [shape = 's32[1]{0}', space=sflag, size = 0x4, scoped, tag = 'scoped memory for tpu_custom_call.1']
    #allocation5 [shape = 'u8[8192]{0}', space=vmem, size = 0x2000, scoped, tag = 'output window, operand 0, single buffered']
    %8 = vsyncpa [#allocation3], 0
    %9 = vsyncpa [#allocation4], 0
    // Predicated region
    $region2: #{tpu_custom_call.1} parent=1 // pred_check
      _
    $region3: #{tpu_custom_call.1} parent=1 // pred_check_branch
      %11 = sbr.rel (0) target = $region5
    $region4: #{tpu_custom_call.1} parent=1 // pred_region
      %s13 = ssub.s32 256, 256
      %14 = vsyncadd [#allocation3], %s13
      %s15 = sshll.u32 [#allocation2], 4
      %s16 = int_to_ptr.vmem [resolvable:$true] %s15
      %21 = dma.hbm_to_vmem [thread:$0]  %s0, 256, %s16, [#allocation3], 128, 128, 8
    $region5: #{tpu_custom_call.1} parent=1 // pred_fallthru
      _
    // Predicated region
    $region6: #{tpu_custom_call.1} parent=1 // pred_check
      _
    $region7: #{tpu_custom_call.1} parent=1 // pred_check_branch
      %23 = sbr.rel (0) target = $region9
    $region8: #{tpu_custom_call.1} parent=1 // pred_region
      _
    $region9: #{tpu_custom_call.1} parent=1 // pred_fallthru
      _
    // Predicated region
    $region10: #{tpu_custom_call.1} parent=1 // pred_check
      _
    $region11: #{tpu_custom_call.1} parent=1 // pred_check_branch
      %25 = sbr.rel (0) target = $region13
    $region12: #{tpu_custom_call.1} parent=1 // pred_region
      _
    $region13: #{tpu_custom_call.1} parent=1 // pred_fallthru
      _
    // Predicated region
    $region14: #{tpu_custom_call.1} parent=1 // pred_check
      _
    $region15: #{tpu_custom_call.1} parent=1 // pred_check_branch
      %27 = sbr.rel (0) target = $region17
    $region16: #{tpu_custom_call.1} parent=1 // pred_region
      %28 = dma.done [#allocation3], 256
    $region17: #{tpu_custom_call.1} parent=1 // pred_fallthru
      _
    %v29 = vld [vmem:[#allocation2] sm:$0xff]
    %v30 = vld [vmem:[#allocation2 + $0x8] sm:$0xff]
    %31 = vadd.xlane.f32.xlu0 %v29
    %v32 = vpop.xlane.xlu0 %31
    %33 = vadd.xlane.f32.xlu0 %v30
    %v34 = vpop.xlane.xlu0 %33
    %v35 = vrcp.pop 128.0
    %v36 = vmul.f32 %v32, %v35
    %v37 = vmul.f32 %v34, %v35
    %v38 = vsub.f32 %v29, %v36
    %v39 = vsub.f32 %v30, %v37
    %v40 = vmul.f32 %v38, %v38
    %v41 = vmul.f32 %v39, %v39
    %42 = vadd.xlane.f32.xlu0 %v40
    %v43 = vpop.xlane.xlu0 %42
    %44 = vadd.xlane.f32.xlu0 %v41
    %v45 = vpop.xlane.xlu0 %44
    %v46 = vmul.f32 %v43, %v35
    %v47 = vmul.f32 %v45, %v35
    %v48 = vadd.f32 %v46, 1e-12
    %v49 = vadd.f32 %v47, 1e-12
    %v50 = vrsqrt.pop %v48
    %v51 = vrsqrt.pop %v49
    %v52 = vld [vmem:[%s1] sm:$0x1]
    %v53 = vld [vmem:[%s2] sm:$0x1]
    %v54 = vmul.f32 %v38, %v50
    %v55 = vmul.f32 %v39, %v51
    %v57 = vlaneseq
    %v58 = vshrl.u32 %v57, 7
    %v59 = vsub.s32 0, %v58
    %v60 = vrot.slane %v52, %v59
    %v62 = vmul.f32 %v60, %v54
    %v63 = vmul.f32 %v60, %v55
    %v65 = vlaneseq
    %v66 = vshrl.u32 %v65, 7
    %v67 = vsub.s32 0, %v66
    %v68 = vrot.slane %v53, %v67
    %v70 = vadd.f32 %v62, %v68
    %v71 = vadd.f32 %v63, %v68
    %72 = vst [vmem:[#allocation5] sm:$0xff] %v70
    %73 = vst [vmem:[#allocation5 + $0x8] sm:$0xff] %v71
    // Predicated region
    $region18: #{tpu_custom_call.1} parent=1 // pred_check
      _
    $region19: #{tpu_custom_call.1} parent=1 // pred_check_branch
      %75 = sbr.rel (0) target = $region21
    $region20: #{tpu_custom_call.1} parent=1 // pred_region
      %s77 = ssub.s32 256, 256
      %78 = vsyncadd [#allocation4], %s77
      %s79 = sshll.u32 [#allocation5], 4
      %s80 = int_to_ptr.vmem [resolvable:$true] %s79
      %85 = dma.vmem_to_hbm [thread:$0]  %s80, 256, %s3, [#allocation4], 128, 128, 8
    $region21: #{tpu_custom_call.1} parent=1 // pred_fallthru
      _
    // Predicated region
    $region22: #{tpu_custom_call.1} parent=1 // pred_check
      _
    $region23: #{tpu_custom_call.1} parent=1 // pred_check_branch
      %87 = sbr.rel (0) target = $region25
    $region24: #{tpu_custom_call.1} parent=1 // pred_region
      %88 = dma.done [#allocation4], 256
    $region25: #{tpu_custom_call.1} parent=1 // pred_fallthru
      _
    %89 = vsyncpa [#allocation3], 1
    %90 = vsyncpa [#allocation4], 1

</llo_original>
